<compile_context>
chip_gen: v6e
topology: v6e:2x2x1
jax: 0.10.0
libtpu: 0.0.40
codegen_flags: <defaults>
</compile_context>

<pallas_src>
import functools
import math

import jax
import jax.numpy as jnp
from jax import lax
from jax.experimental import pallas as pl
from jax.experimental.pallas import tpu as pltpu


_SQRT_2 = math.sqrt(2.0)
_SQRT_2_OVER_PI = math.sqrt(2.0 / math.pi)


def _round_up(x, m):
    return (x + m - 1) // m * m


def _vmem_capacity_bytes():
    """Physical VMEM per core; falls back to device_kind if get_tpu_info fails."""
    try:
        info = pltpu.get_tpu_info()
        cap = getattr(info, "vmem_capacity_bytes", None)
        if cap:
            return int(cap)
    except Exception:
        pass
    try:
        kind = jax.devices()[0].device_kind.lower()
    except Exception:
        kind = ""
    if "v7" in kind:
        return 64 * 1024 * 1024      # v7x: 64 MiB / TensorCore
    return 128 * 1024 * 1024         # v5e / v6e: 128 MiB


def _vmem_estimate(tm, E, H, x_bytes, out_bytes, w_bytes, weight_buffers):
    """VMEM bytes for one tile plan, incl. compiler-materialized intermediates."""
    io_tiles = 2 * tm * E * (x_bytes + out_bytes)                # double-buffered x / out tiles
    weights = weight_buffers * ((E * H + H * E) * w_bytes + (H + E) * 4)
    inter = (tm * E * w_bytes                                    # in-kernel cast of x
             + tm * H * 4                                        # f32 fc1 accumulator / GELU
             + tm * H * w_bytes                                  # GELU result cast for fc2
             + tm * E * 4)                                       # f32 fc2 accumulator
    return int(1.2 * (io_tiles + weights + inter))               # headroom for Mosaic scratch


def _gelu_f32(h, approximate):
    # h is the f32 fc1 accumulator.  Exact erf matches torch.nn.GELU().
    if approximate:
        # Single EUP tanh push — co-issues with vmatmul; opt-in only.
        return 0.5 * h * (1.0 + jnp.tanh(_SQRT_2_OVER_PI * (h + 0.044715 * h * h * h)))
    return 0.5 * h * (1.0 + lax.erf(h / _SQRT_2))


def _mlp_kernel(x_ref, w1_ref, b1_ref, w2_ref, b2_ref, o_ref, *,
                compute_dtype, gelu_approximate):
    # Cast the activation tile in-kernel (VPU, hidden under the MXU) so the
    # wrapper never writes a casted copy of x back to HBM.
    x = x_ref[...].astype(compute_dtype)                               # (tm, E)
    h = jnp.dot(x, w1_ref[...], preferred_element_type=jnp.float32)    # (tm, H) f32
    h = h + b1_ref[...]                                                # f32 bias add
    h = _gelu_f32(h, gelu_approximate)                                 # f32
    h = h.astype(compute_dtype)                                        # bf16 on the fast path
    o = jnp.dot(h, w2_ref[...], preferred_element_type=jnp.float32)    # (tm, E) f32
    o = o + b2_ref[...]
    # Dropout(p=0.0) is the identity and is elided.
    o_ref[...] = o.astype(o_ref.dtype)


def mlp_block(x, w1, b1, w2, b2, *, token_tile=None, compute_dtype=jnp.bfloat16,
              single_buffer_weights=True, gelu_approximate=False,
              vmem_limit_bytes=None):
    """Fused ViT MLP block.

    x: (B, S, E).  w1: (E, H), b1: (H,), w2: (H, E), b2: (E,).
    compute_dtype: dtype of the MXU matmul operands (default bf16; accumulation
      is always f32).  Use jnp.float32 for exact f32 semantics.
    """
    B, S, E = x.shape
    H = w1.shape[1]
    out_dtype = x.dtype
    cdt = jnp.dtype(compute_dtype if compute_dtype is not None else x.dtype)

    T = B * S
    x2 = x.reshape(T, E)                       # contiguous reshape: no HBM copy, no cast
    w1c = w1.astype(cdt)                       # weights cast once in the wrapper
    w2c = w2.astype(cdt)
    b1_2 = b1.reshape(1, H).astype(jnp.float32)   # biases added post-accumulation in f32
    b2_2 = b2.reshape(1, E).astype(jnp.float32)

    x_bytes = jnp.dtype(x.dtype).itemsize
    out_bytes = jnp.dtype(out_dtype).itemsize
    w_bytes = cdt.itemsize
    w_buf = 1 if single_buffer_weights else 2

    # Per-generation VMEM budget: ~85% of physical (≈110 MiB on v5e/v6e,
    # ≈54 MiB on v7x) leaves room for Mosaic internal scratch.
    budget = int(0.85 * _vmem_capacity_bytes())

    # Token tile: largest candidate whose full plan fits the budget.  Weights
    # are resident, so bigger tiles only cost VMEM and amortize the ~0.35 µs
    # per-grid-step overhead; 512 fills the 256x256 MXU M dim twice per stage.
    if token_tile is None:
        tm = 8
        for cand in (512, 384, 256, 128, 64, 32, 16, 8):
            if _vmem_estimate(cand, E, H, x_bytes, out_bytes, w_bytes, w_buf) <= budget:
                tm = cand
                break
    else:
        tm = token_tile
    tm = max(8, (min(tm, _round_up(T, 8)) // 8) * 8)

    T_pad = _round_up(T, tm)
    if T_pad != T:
        x2 = jnp.pad(x2, ((0, T_pad - T), (0, 0)))   # only for ragged T; padded rows are dropped

    est = _vmem_estimate(tm, E, H, x_bytes, out_bytes, w_bytes, w_buf)
    if vmem_limit_bytes is None:
        # Derived from the tile plan: never below the estimate (auto-chosen tm
        # guarantees est <= budget), never above the per-generation budget.
        vmem_limit_bytes = min(max(est, 32 * 1024 * 1024), budget)

    # Advisory cost estimate: two matmuls (2*M*N*K flops each) + one
    # transcendental-equivalent per GELU element.
    flops = int(4 * T_pad * E * H)
    transcendentals = int(T_pad * H)
    bytes_accessed = int(T_pad * E * (x_bytes + out_bytes)
                         + (E * H + H * E) * w_bytes + (H + E) * 4)

    kernel = functools.partial(_mlp_kernel, compute_dtype=cdt,
                               gelu_approximate=gelu_approximate)

    def _call(single_buffer):
        def resident(shape):
            # Constant index_map => block fetched exactly once across the grid.
            # Single-buffer it so the second pipeline buffer doesn't waste VMEM.
            if single_buffer:
                return pl.BlockSpec(shape, lambda i: (0, 0),
                                    pipeline_mode=pl.Buffered(1))
            return pl.BlockSpec(shape, lambda i: (0, 0))

        return pl.pallas_call(
            kernel,
            out_shape=jax.ShapeDtypeStruct((T_pad, E), out_dtype),
            grid_spec=pltpu.PrefetchScalarGridSpec(
                num_scalar_prefetch=0,
                grid=(T_pad // tm,),
                in_specs=[
                    pl.BlockSpec((tm, E), lambda i: (i, 0)),   # x tile (original dtype)
                    resident((E, H)),                          # W1 (resident, compute dtype)
                    resident((1, H)),                          # b1 (f32)
                    resident((H, E)),                          # W2 (resident, compute dtype)
                    resident((1, E)),                          # b2 (f32)
                ],
                # Real ViT shapes have E >= 768 => lane-dense output stores.
                out_specs=pl.BlockSpec((tm, E), lambda i: (i, 0)),
            ),
            compiler_params=pltpu.CompilerParams(
                dimension_semantics=("parallel",),             # shards across v7x's 2 TCs
                vmem_limit_bytes=int(vmem_limit_bytes)),
            cost_estimate=pl.CostEstimate(
                flops=flops, transcendentals=transcendentals,
                bytes_accessed=bytes_accessed),
        )(x2, w1c, b1_2, w2c, b2_2)

    if single_buffer_weights:
        try:
            out = _call(True)
        except Exception:
            # Fallback for jax builds where pipeline_mode=Buffered(1) is not
            # supported on pallas_call: identical semantics, ~2x resident VMEM.
            out = _call(False)
    else:
        out = _call(False)

    out = out[:T]
    return out.reshape(B, S, E)


def mlp_reference(x, w1, b1, w2, b2):
    h = jnp.einsum("bse,eh->bsh", x, w1) + b1
    h = 0.5 * h * (1.0 + lax.erf(h / _SQRT_2))
    return jnp.einsum("bsh,he->bse", h, w2) + b2


if __name__ == "__main__":
    # Small ViT-ish shapes: batch=2, seq=8, embed_dim=32, hidden_features=64.
    B, S, E, H = 2, 8, 32, 64
    key = jax.random.PRNGKey(0)
    kx, k1, kb1, k2, kb2 = jax.random.split(key, 5)

    x = jax.random.normal(kx, (B, S, E), dtype=jnp.float32)
    # PyTorch Linear weights are (out, in); stored pre-transposed here.
    w1 = jax.random.normal(k1, (E, H), dtype=jnp.float32) * (1.0 / math.sqrt(E))
    b1 = jax.random.normal(kb1, (H,), dtype=jnp.float32) * 0.01
    w2 = jax.random.normal(k2, (H, E), dtype=jnp.float32) * (1.0 / math.sqrt(H))
    b2 = jax.random.normal(kb2, (E,), dtype=jnp.float32) * 0.01

    ref = mlp_reference(x, w1, b1, w2, b2)

    # Default path: bf16 matmul operands, f32 accumulation, exact f32 GELU.
    out = jax.block_until_ready(mlp_block(x, w1, b1, w2, b2))
    assert out.shape == (B, S, E)
    assert jnp.allclose(out, ref, atol=5e-2, rtol=5e-2), "bf16 mismatch vs reference"

    # Exact f32 path — matches the PyTorch module to tight tolerance.
    out_f32 = jax.block_until_ready(
        mlp_block(x, w1, b1, w2, b2, compute_dtype=jnp.float32))
    assert out_f32.shape == (B, S, E)
    assert jnp.allclose(out_f32, ref, atol=1e-5, rtol=1e-5), "f32 mismatch vs reference"

    print("KERNEL_OK")
</pallas_src>

<mosaic_0001>
module attributes {stable_mosaic.version = 11 : i64} {
  func.func @_mlp_kernel(%arg0: i32, %arg1: memref<16x32xf32, #tpu.memory_space<vmem>>, %arg2: memref<32x64xbf16, #tpu.memory_space<vmem>>, %arg3: memref<1x64xf32, #tpu.memory_space<vmem>>, %arg4: memref<64x32xbf16, #tpu.memory_space<vmem>>, %arg5: memref<1x32xf32, #tpu.memory_space<vmem>>, %arg6: memref<16x32xf32, #tpu.memory_space<vmem>>) attributes {dimension_semantics = [#tpu.dimension_semantics<parallel>], iteration_bounds = array<i64: 1>, scalar_prefetch = 0 : i64, scratch_operands = 0 : i64, tpu.core_type = #tpu.core_type<tc>, window_params = [{transform_indices = @transform_0, window_bounds = array<i64: 16, 32>}, {pipeline_mode = #tpu.pipeline_mode<synchronous>, transform_indices = @transform_1, window_bounds = array<i64: 32, 64>}, {pipeline_mode = #tpu.pipeline_mode<synchronous>, transform_indices = @transform_2, window_bounds = array<i64: 1, 64>}, {pipeline_mode = #tpu.pipeline_mode<synchronous>, transform_indices = @transform_3, window_bounds = array<i64: 64, 32>}, {pipeline_mode = #tpu.pipeline_mode<synchronous>, transform_indices = @transform_4, window_bounds = array<i64: 1, 32>}, {transform_indices = @transform_5, window_bounds = array<i64: 16, 32>}]} {
    %c0 = arith.constant 0 : index
    %c0_0 = arith.constant 0 : index
    %0 = vector.load %arg1[%c0, %c0_0] : memref<16x32xf32, #tpu.memory_space<vmem>>, vector<16x32xf32>
    %1 = arith.truncf %0 : vector<16x32xf32> to vector<16x32xbf16>
    %c0_1 = arith.constant 0 : index
    %c0_2 = arith.constant 0 : index
    %2 = vector.load %arg2[%c0_1, %c0_2] : memref<32x64xbf16, #tpu.memory_space<vmem>>, vector<32x64xbf16>
    %cst = arith.constant dense<0.000000e+00> : vector<16x64xf32>
    %3 = tpu.matmul %1, %2, %cst {dimension_numbers = #tpu.dot_dimension_numbers<[1], [0], [0], [1], [0, 0, 1, 1], [], []>} : vector<16x32xbf16>, vector<32x64xbf16>, vector<16x64xf32> -> vector<16x64xf32>
    %c0_3 = arith.constant 0 : index
    %c0_4 = arith.constant 0 : index
    %4 = vector.load %arg3[%c0_3, %c0_4] : memref<1x64xf32, #tpu.memory_space<vmem>>, vector<1x64xf32>
    %5 = vector.broadcast %4 : vector<1x64xf32> to vector<16x64xf32>
    %6 = arith.addf %3, %5 : vector<16x64xf32>
    %cst_5 = arith.constant 5.000000e-01 : f32
    %7 = vector.broadcast %cst_5 : f32 to vector<16x64xf32>
    %8 = arith.mulf %7, %6 : vector<16x64xf32>
    %cst_6 = arith.constant 1.41421354 : f32
    %9 = vector.broadcast %cst_6 : f32 to vector<16x64xf32>
    %10 = arith.divf %6, %9 : vector<16x64xf32>
    %11 = math.erf %10 : vector<16x64xf32>
    %cst_7 = arith.constant 1.000000e+00 : f32
    %12 = vector.broadcast %cst_7 : f32 to vector<16x64xf32>
    %13 = arith.addf %12, %11 : vector<16x64xf32>
    %14 = arith.mulf %8, %13 : vector<16x64xf32>
    %15 = arith.truncf %14 : vector<16x64xf32> to vector<16x64xbf16>
    %c0_8 = arith.constant 0 : index
    %c0_9 = arith.constant 0 : index
    %16 = vector.load %arg4[%c0_8, %c0_9] : memref<64x32xbf16, #tpu.memory_space<vmem>>, vector<64x32xbf16>
    %cst_10 = arith.constant dense<0.000000e+00> : vector<16x32xf32>
    %17 = tpu.matmul %15, %16, %cst_10 {dimension_numbers = #tpu.dot_dimension_numbers<[1], [0], [0], [1], [0, 0, 1, 1], [], []>} : vector<16x64xbf16>, vector<64x32xbf16>, vector<16x32xf32> -> vector<16x32xf32>
    %c0_11 = arith.constant 0 : index
    %c0_12 = arith.constant 0 : index
    %18 = vector.load %arg5[%c0_11, %c0_12] : memref<1x32xf32, #tpu.memory_space<vmem>>, vector<1x32xf32>
    %19 = vector.broadcast %18 : vector<1x32xf32> to vector<16x32xf32>
    %20 = arith.addf %17, %19 : vector<16x32xf32>
    %c0_13 = arith.constant 0 : index
    %c0_14 = arith.constant 0 : index
    %21 = vector.load %arg6[%c0_13, %c0_14] : memref<16x32xf32, #tpu.memory_space<vmem>>, vector<16x32xf32>
    tpu.vector_store %arg6[%c0_13, %c0_14], %20 {strides = array<i32>} : memref<16x32xf32, #tpu.memory_space<vmem>>, vector<16x32xf32>,
    return
  }
  func.func @transform_0(%arg0: i32) -> (i32, i32) {
    %c0_i32 = arith.constant 0 : i32
    %c0_i32_0 = arith.constant 0 : i32
    return %arg0, %c0_i32 : i32, i32
  }
  func.func @transform_1(%arg0: i32) -> (i32, i32) {
    %c0_i32 = arith.constant 0 : i32
    %c0_i32_0 = arith.constant 0 : i32
    %c0_i32_1 = arith.constant 0 : i32
    return %c0_i32, %c0_i32_0 : i32, i32
  }
  func.func @transform_2(%arg0: i32) -> (i32, i32) {
    %c0_i32 = arith.constant 0 : i32
    %c0_i32_0 = arith.constant 0 : i32
    %c0_i32_1 = arith.constant 0 : i32
    return %c0_i32, %c0_i32_0 : i32, i32
  }
  func.func @transform_3(%arg0: i32) -> (i32, i32) {
    %c0_i32 = arith.constant 0 : i32
    %c0_i32_0 = arith.constant 0 : i32
    %c0_i32_1 = arith.constant 0 : i32
    return %c0_i32, %c0_i32_0 : i32, i32
  }
  func.func @transform_4(%arg0: i32) -> (i32, i32) {
    %c0_i32 = arith.constant 0 : i32
    %c0_i32_0 = arith.constant 0 : i32
    %c0_i32_1 = arith.constant 0 : i32
    return %c0_i32, %c0_i32_0 : i32, i32
  }
  func.func @transform_5(%arg0: i32) -> (i32, i32) {
    %c0_i32 = arith.constant 0 : i32
    %c0_i32_0 = arith.constant 0 : i32
    return %arg0, %c0_i32 : i32, i32
  }
}

module attributes {stable_mosaic.version = 11 : i64} {
  func.func @_mlp_kernel(%arg0: i32, %arg1: memref<16x32xf32, #tpu.memory_space<vmem>>, %arg2: memref<32x64xbf16, #tpu.memory_space<vmem>>, %arg3: memref<1x64xf32, #tpu.memory_space<vmem>>, %arg4: memref<64x32xbf16, #tpu.memory_space<vmem>>, %arg5: memref<1x32xf32, #tpu.memory_space<vmem>>, %arg6: memref<16x32xf32, #tpu.memory_space<vmem>>) attributes {dimension_semantics = [#tpu.dimension_semantics<parallel>], iteration_bounds = array<i64: 1>, scalar_prefetch = 0 : i64, scratch_operands = 0 : i64, tpu.core_type = #tpu.core_type<tc>, window_params = [{transform_indices = @transform_0, window_bounds = array<i64: 16, 32>}, {pipeline_mode = #tpu.pipeline_mode<synchronous>, transform_indices = @transform_1, window_bounds = array<i64: 32, 64>}, {pipeline_mode = #tpu.pipeline_mode<synchronous>, transform_indices = @transform_2, window_bounds = array<i64: 1, 64>}, {pipeline_mode = #tpu.pipeline_mode<synchronous>, transform_indices = @transform_3, window_bounds = array<i64: 64, 32>}, {pipeline_mode = #tpu.pipeline_mode<synchronous>, transform_indices = @transform_4, window_bounds = array<i64: 1, 32>}, {transform_indices = @transform_5, window_bounds = array<i64: 16, 32>}]} {
    %c0 = arith.constant 0 : index
    %c0_0 = arith.constant 0 : index
    %0 = vector.load %arg1[%c0, %c0_0] : memref<16x32xf32, #tpu.memory_space<vmem>>, vector<16x32xf32>
    %1 = arith.truncf %0 : vector<16x32xf32> to vector<16x32xbf16>
    %c0_1 = arith.constant 0 : index
    %c0_2 = arith.constant 0 : index
    %2 = vector.load %arg2[%c0_1, %c0_2] : memref<32x64xbf16, #tpu.memory_space<vmem>>, vector<32x64xbf16>
    %cst = arith.constant dense<0.000000e+00> : vector<16x64xf32>
    %3 = tpu.matmul %1, %2, %cst {dimension_numbers = #tpu.dot_dimension_numbers<[1], [0], [0], [1], [0, 0, 1, 1], [], []>} : vector<16x32xbf16>, vector<32x64xbf16>, vector<16x64xf32> -> vector<16x64xf32>
    %c0_3 = arith.constant 0 : index
    %c0_4 = arith.constant 0 : index
    %4 = vector.load %arg3[%c0_3, %c0_4] : memref<1x64xf32, #tpu.memory_space<vmem>>, vector<1x64xf32>
    %5 = vector.broadcast %4 : vector<1x64xf32> to vector<16x64xf32>
    %6 = arith.addf %3, %5 : vector<16x64xf32>
    %cst_5 = arith.constant 5.000000e-01 : f32
    %7 = vector.broadcast %cst_5 : f32 to vector<16x64xf32>
    %8 = arith.mulf %7, %6 : vector<16x64xf32>
    %cst_6 = arith.constant 1.41421354 : f32
    %9 = vector.broadcast %cst_6 : f32 to vector<16x64xf32>
    %10 = arith.divf %6, %9 : vector<16x64xf32>
    %11 = math.erf %10 : vector<16x64xf32>
    %cst_7 = arith.constant 1.000000e+00 : f32
    %12 = vector.broadcast %cst_7 : f32 to vector<16x64xf32>
    %13 = arith.addf %12, %11 : vector<16x64xf32>
    %14 = arith.mulf %8, %13 : vector<16x64xf32>
    %15 = arith.truncf %14 : vector<16x64xf32> to vector<16x64xbf16>
    %c0_8 = arith.constant 0 : index
    %c0_9 = arith.constant 0 : index
    %16 = vector.load %arg4[%c0_8, %c0_9] : memref<64x32xbf16, #tpu.memory_space<vmem>>, vector<64x32xbf16>
    %cst_10 = arith.constant dense<0.000000e+00> : vector<16x32xf32>
    %17 = tpu.matmul %15, %16, %cst_10 {dimension_numbers = #tpu.dot_dimension_numbers<[1], [0], [0], [1], [0, 0, 1, 1], [], []>} : vector<16x64xbf16>, vector<64x32xbf16>, vector<16x32xf32> -> vector<16x32xf32>
    %c0_11 = arith.constant 0 : index
    %c0_12 = arith.constant 0 : index
    %18 = vector.load %arg5[%c0_11, %c0_12] : memref<1x32xf32, #tpu.memory_space<vmem>>, vector<1x32xf32>
    %19 = vector.broadcast %18 : vector<1x32xf32> to vector<16x32xf32>
    %20 = arith.addf %17, %19 : vector<16x32xf32>
    %c0_13 = arith.constant 0 : index
    %c0_14 = arith.constant 0 : index
    %21 = vector.load %arg6[%c0_13, %c0_14] : memref<16x32xf32, #tpu.memory_space<vmem>>, vector<16x32xf32>
    tpu.vector_store %arg6[%c0_13, %c0_14], %20 {strides = array<i32>} : memref<16x32xf32, #tpu.memory_space<vmem>>, vector<16x32xf32>,
    return
  }
  func.func @transform_0(%arg0: i32) -> (i32, i32) {
    %c0_i32 = arith.constant 0 : i32
    %c0_i32_0 = arith.constant 0 : i32
    return %arg0, %c0_i32 : i32, i32
  }
  func.func @transform_1(%arg0: i32) -> (i32, i32) {
    %c0_i32 = arith.constant 0 : i32
    %c0_i32_0 = arith.constant 0 : i32
    %c0_i32_1 = arith.constant 0 : i32
    return %c0_i32, %c0_i32_0 : i32, i32
  }
  func.func @transform_2(%arg0: i32) -> (i32, i32) {
    %c0_i32 = arith.constant 0 : i32
    %c0_i32_0 = arith.constant 0 : i32
    %c0_i32_1 = arith.constant 0 : i32
    return %c0_i32, %c0_i32_0 : i32, i32
  }
  func.func @transform_3(%arg0: i32) -> (i32, i32) {
    %c0_i32 = arith.constant 0 : i32
    %c0_i32_0 = arith.constant 0 : i32
    %c0_i32_1 = arith.constant 0 : i32
    return %c0_i32, %c0_i32_0 : i32, i32
  }
  func.func @transform_4(%arg0: i32) -> (i32, i32) {
    %c0_i32 = arith.constant 0 : i32
    %c0_i32_0 = arith.constant 0 : i32
    %c0_i32_1 = arith.constant 0 : i32
    return %c0_i32, %c0_i32_0 : i32, i32
  }
  func.func @transform_5(%arg0: i32) -> (i32, i32) {
    %c0_i32 = arith.constant 0 : i32
    %c0_i32_0 = arith.constant 0 : i32
    return %arg0, %c0_i32 : i32, i32
  }
}

</mosaic_0001>

<llo_original>
// kernel: tpu_custom_call.1
$region0: #{tpu_custom_call.1}
  #allocation0 [shape = 'u32[]', space=smem, size = 0x4, offset = 0x4, fixed_abs, tag = 'smem constant byte address 0x4 - core index']
  #allocation1 [shape = 'u32[144,128]{1,0:T(1,128)}', space=vmem, size = 0x12000, scoped, tag = 'internal scratch']
  %s0 = inlined_call_operand.vmem [shape: f32[16,32], index: 0, kind: input, shape index: {}]
  %s1 = inlined_call_operand.vmem [shape: bf16[32,64], index: 1, kind: input, shape index: {}]
  %s2 = inlined_call_operand.vmem [shape: f32[1,64], index: 2, kind: input, shape index: {}]
  %s3 = inlined_call_operand.vmem [shape: bf16[64,32], index: 3, kind: input, shape index: {}]
  %s4 = inlined_call_operand.vmem [shape: f32[1,32], index: 4, kind: input, shape index: {}]
  %s5 = inlined_call_operand.hbm [shape: f32[16,32], index: 5, kind: output, shape index: {}]
  %s6 = sld [smem:[#allocation0]]
  $region30: #{tpu_custom_call.1} parent=0
    _
  %s8 = ssub.s32 1, %s6
  %s9 = scalar_select 0, %s8, %s6
  $region1: #{tpu_custom_call.1} parent=0
    #allocation2 [shape = 'u8[8192]{0}', space=vmem, size = 0x2000, scoped, tag = 'output window, operand 0, single buffered']
    #allocation3 [shape = 's32[1]{0}', space=sflag, size = 0x4, scoped, tag = 'scoped memory for tpu_custom_call.1']
    %10 = vsyncpa [#allocation3], 0
    // Predicated region
    $region2: #{tpu_custom_call.1} parent=1 // pred_check
      _
    $region3: #{tpu_custom_call.1} parent=1 // pred_check_branch
      %12 = sbr.rel (0) target = $region5
    $region4: #{tpu_custom_call.1} parent=1 // pred_region
      _
    $region5: #{tpu_custom_call.1} parent=1 // pred_fallthru
      _
    // Predicated region
    $region6: #{tpu_custom_call.1} parent=1 // pred_check
      _
    $region7: #{tpu_custom_call.1} parent=1 // pred_check_branch
      %14 = sbr.rel (0) target = $region9
    $region8: #{tpu_custom_call.1} parent=1 // pred_region
      _
    $region9: #{tpu_custom_call.1} parent=1 // pred_fallthru
      _
    // Predicated region
    $region10: #{tpu_custom_call.1} parent=1 // pred_check
      _
    $region11: #{tpu_custom_call.1} parent=1 // pred_check_branch
      %16 = sbr.rel (0) target = $region13
    $region12: #{tpu_custom_call.1} parent=1 // pred_region
      _
    $region13: #{tpu_custom_call.1} parent=1 // pred_fallthru
      _
    // Predicated region
    $region14: #{tpu_custom_call.1} parent=1 // pred_check
      _
    $region15: #{tpu_custom_call.1} parent=1 // pred_check_branch
      %18 = sbr.rel (0) target = $region17
    $region16: #{tpu_custom_call.1} parent=1 // pred_region
      _
    $region17: #{tpu_custom_call.1} parent=1 // pred_fallthru
      _
    // Predicated region
    $region18: #{tpu_custom_call.1} parent=1 // pred_check
      _
    $region19: #{tpu_custom_call.1} parent=1 // pred_check_branch
      %20 = sbr.rel (0) target = $region21
    $region20: #{tpu_custom_call.1} parent=1 // pred_region
      _
    $region21: #{tpu_custom_call.1} parent=1 // pred_fallthru
      _
    %v22 = vld [vmem:[%s0] sm:$0xff]
    %v23 = vld [vmem:[%s0 + $0x8] sm:$0xff]
    %v24 = vpack.c.bf16 %v23, %v22
    %v25 = vld [vmem:[%s1] sm:$0xf]
    %v26 = vld [vmem:[%s1 + $0x4] sm:$0xf]
    %v27 = vld [vmem:[%s1 + $0x8] sm:$0xf]
    %v28 = vld [vmem:[%s1 + $0xc] sm:$0xf]
    %v29 = vld [vmem:[%s2] sm:$0x1]
    %v31 = vlaneseq
    %v32 = vshrl.u32 %v31, 7
    %v33 = vsub.s32 0, %v32
    %v34 = vrot.slane %v29, %v33
    %v40 = vunpack.c.l.b16 %v25
    %v41 = vunpack.c.l.b16 %v26
    %v42 = vunpack.c.l.b16 %v27
    %v43 = vunpack.c.l.b16 %v28
    %v44 = vpack.c.b16 %v41, %v40
    %v45 = vpack.c.b16 %v43, %v42
    %vm48 = vcmask 261120
    %v50 = vsel %vm48, %v24, 0
    %52 = vmatprep.subr.bf16.mxu0 0
    %53 = vmatpush1.bf16.msra.mxu0 0
    %54 = vmatprep.subr.bf16.mxu0 0
    %55 = vmatpush1.bf16.msra.mxu0 0
    %56 = vmatprep.subr.bf16.mxu0 0
    %57 = vmatpush1.bf16.msra.mxu0 0
    %58 = vmatprep.subr.bf16.mxu0 0
    %59 = vmatpush1.bf16.msra.mxu0 0
    %60 = vmatprep.subr.bf16.mxu0 0
    %61 = vmatpush1.bf16.msra.mxu0 0
    %62 = vmatprep.subr.bf16.mxu0 0
    %63 = vmatpush1.bf16.msra.mxu0 0
    %64 = vmatprep.subr.bf16.mxu0 0
    %65 = vmatpush1.bf16.msra.mxu0 %v45
    %66 = vmatprep.subr.bf16.mxu0 0
    %67 = vmatpush1.bf16.msra.mxu0 %v44
    %68 = vmatprep.subr.bf16.mxu0 0
    %69 = vmatpush2.bf16.msra.mxu0 0
    %70 = vmatprep.subr.bf16.mxu0 0
    %71 = vmatpush2.bf16.msra.mxu0 0
    %72 = vmatprep.subr.bf16.mxu0 0
    %73 = vmatpush2.bf16.msra.mxu0 0
    %74 = vmatprep.subr.bf16.mxu0 0
    %75 = vmatpush2.bf16.msra.mxu0 0
    %76 = vmatprep.subr.bf16.mxu0 0
    %77 = vmatpush2.bf16.msra.mxu0 0
    %78 = vmatprep.subr.bf16.mxu0 0
    %79 = vmatpush2.bf16.msra.mxu0 0
    %80 = vmatprep.subr.bf16.mxu0 0
    %81 = vmatpush2.bf16.msra.mxu0 0
    %82 = vmatprep.subr.bf16.mxu0 0
    %83 = vmatpush2.bf16.msra.mxu0 0
    %84 = vmatprep.mubr.bf16.mxu0 0
    %85 = vmatmul.mubr.bf16.gmra.mxu0 %v50
    %v86 = vpop.f32.mrf.mxu0
    %v87 = vadd.f32 %v34, %v86
    %v88 = vpop.f32.mrf.mxu0
    %v89 = vpop.f32.mrf.mxu0
    %v90 = vadd.f32 %v34, %v89
    %v91 = vpop.f32.mrf.mxu0
    %92 = vdwg.mxu0
    %v93 = vmul.f32 %v87, 0.5
    %v94 = vmul.f32 %v90, 0.5
    %v95 = vrcp.pop 1.4142135
    %v96 = vmul.f32 %v87, %v95
    %v97 = vmul.f32 %v90, %v95
    %v98 = verf.f32.pop %v96
    %v99 = verf.f32.pop %v97
    %v100 = vadd.f32 %v98, 1.0
    %v101 = vadd.f32 %v99, 1.0
    %v102 = vmul.f32 %v93, %v100
    %v103 = vmul.f32 %v94, %v101
    %v104 = vpack.c.bf16 %v103, %v102
    %v105 = vld [vmem:[%s3] sm:$0xf]
    %v106 = vld [vmem:[%s3 + $0x4] sm:$0xf]
    %v107 = vld [vmem:[%s3 + $0x8] sm:$0xf]
    %v108 = vld [vmem:[%s3 + $0xc] sm:$0xf]
    %v109 = vld [vmem:[%s3 + $0x10] sm:$0xf]
    %v110 = vld [vmem:[%s3 + $0x14] sm:$0xf]
    %v111 = vld [vmem:[%s3 + $0x18] sm:$0xf]
    %v112 = vld [vmem:[%s3 + $0x1c] sm:$0xf]
    %v113 = vld [vmem:[%s4] sm:$0x1]
    %v115 = vlaneseq
    %v116 = vshrl.u32 %v115, 7
    %v117 = vsub.s32 0, %v116
    %v118 = vrot.slane %v113, %v117
    %v128 = vunpack.c.l.b16 %v105
    %v129 = vunpack.c.l.b16 %v106
    %v130 = vunpack.c.l.b16 %v107
    %v131 = vunpack.c.l.b16 %v108
    %v132 = vunpack.c.l.b16 %v109
    %v133 = vunpack.c.l.b16 %v110
    %v134 = vunpack.c.l.b16 %v111
    %v135 = vunpack.c.l.b16 %v112
    %v136 = vpack.c.b16 %v129, %v128
    %v137 = vpack.c.b16 %v131, %v130
    %v138 = vpack.c.b16 %v133, %v132
    %v139 = vpack.c.b16 %v135, %v134
    %vm144 = vcmask 523264
    %v146 = vsel %vm144, %v104, 0
    %148 = vmatprep.subr.bf16.mxu0 0
    %149 = vmatpush1.bf16.msra.mxu0 0
    %150 = vmatprep.subr.bf16.mxu0 0
    %151 = vmatpush1.bf16.msra.mxu0 0
    %152 = vmatprep.subr.bf16.mxu0 0
    %153 = vmatpush1.bf16.msra.mxu0 0
    %154 = vmatprep.subr.bf16.mxu0 0
    %155 = vmatpush1.bf16.msra.mxu0 0
    %156 = vmatprep.subr.bf16.mxu0 0
    %157 = vmatpush1.bf16.msra.mxu0 %v139
    %158 = vmatprep.subr.bf16.mxu0 0
    %159 = vmatpush1.bf16.msra.mxu0 %v138
    %160 = vmatprep.subr.bf16.mxu0 0
    %161 = vmatpush1.bf16.msra.mxu0 %v137
    %162 = vmatprep.subr.bf16.mxu0 0
    %163 = vmatpush1.bf16.msra.mxu0 %v136
    %164 = vmatprep.subr.bf16.mxu0 0
    %165 = vmatpush2.bf16.msra.mxu0 0
    %166 = vmatprep.subr.bf16.mxu0 0
    %167 = vmatpush2.bf16.msra.mxu0 0
    %168 = vmatprep.subr.bf16.mxu0 0
    %169 = vmatpush2.bf16.msra.mxu0 0
    %170 = vmatprep.subr.bf16.mxu0 0
    %171 = vmatpush2.bf16.msra.mxu0 0
    %172 = vmatprep.subr.bf16.mxu0 0
    %173 = vmatpush2.bf16.msra.mxu0 0
    %174 = vmatprep.subr.bf16.mxu0 0
    %175 = vmatpush2.bf16.msra.mxu0 0
    %176 = vmatprep.subr.bf16.mxu0 0
    %177 = vmatpush2.bf16.msra.mxu0 0
    %178 = vmatprep.subr.bf16.mxu0 0
    %179 = vmatpush2.bf16.msra.mxu0 0
    %180 = vmatprep.mubr.bf16.mxu0 0
    %181 = vmatmul.mubr.bf16.gmra.mxu0 %v146
    %v182 = vpop.f32.mrf.mxu0
    %v183 = vadd.f32 %v118, %v182
    %v184 = vpop.f32.mrf.mxu0
    %v185 = vpop.f32.mrf.mxu0
    %v186 = vadd.f32 %v118, %v185
    %v187 = vpop.f32.mrf.mxu0
    %188 = vdwg.mxu0
    %189 = vst.msk [vmem:[#allocation2] sm:$0xff] %vm48, %v183
    %190 = vst.msk [vmem:[#allocation2 + $0x8] sm:$0xff] %vm48, %v186
    // Predicated region
    $region22: #{tpu_custom_call.1} parent=1 // pred_check
      _
    $region23: #{tpu_custom_call.1} parent=1 // pred_check_branch
      %192 = sbr.rel (0) target = $region25
    $region24: #{tpu_custom_call.1} parent=1 // pred_region
      %s194 = ssub.s32 256, 256
      %195 = vsyncadd [#allocation3], %s194
      %s196 = sshll.u32 [#allocation2], 4
      %s197 = int_to_ptr.vmem [resolvable:$true] %s196
      %202 = dma.vmem_to_hbm [thread:$0]  %s197, 256, %s5, [#allocation3], 128, 128, 8
    $region25: #{tpu_custom_call.1} parent=1 // pred_fallthru
      _
    // Predicated region
    $region26: #{tpu_custom_call.1} parent=1 // pred_check
      _
    $region27: #{tpu_custom_call.1} parent=1 // pred_check_branch
      %204 = sbr.rel (0) target = $region29
    $region28: #{tpu_custom_call.1} parent=1 // pred_region
      %205 = dma.done [#allocation3], 256
    $region29: #{tpu_custom_call.1} parent=1 // pred_fallthru
      _
    %206 = vsyncpa [#allocation3], 1

// kernel: tpu_custom_call.1
$region0: #{tpu_custom_call.1}
  #allocation0 [shape = 'u32[]', space=smem, size = 0x4, offset = 0x4, fixed_abs, tag = 'smem constant byte address 0x4 - core index']
  #allocation1 [shape = 'u32[144,128]{1,0:T(1,128)}', space=vmem, size = 0x12000, scoped, tag = 'internal scratch']
  %s0 = inlined_call_operand.vmem [shape: f32[16,32], index: 0, kind: input, shape index: {}]
  %s1 = inlined_call_operand.vmem [shape: bf16[32,64], index: 1, kind: input, shape index: {}]
  %s2 = inlined_call_operand.vmem [shape: f32[1,64], index: 2, kind: input, shape index: {}]
  %s3 = inlined_call_operand.vmem [shape: bf16[64,32], index: 3, kind: input, shape index: {}]
  %s4 = inlined_call_operand.vmem [shape: f32[1,32], index: 4, kind: input, shape index: {}]
  %s5 = inlined_call_operand.hbm [shape: f32[16,32], index: 5, kind: output, shape index: {}]
  %s6 = sld [smem:[#allocation0]]
  $region30: #{tpu_custom_call.1} parent=0
    _
  %s8 = ssub.s32 1, %s6
  %s9 = scalar_select 0, %s8, %s6
  $region1: #{tpu_custom_call.1} parent=0
    #allocation2 [shape = 'u8[8192]{0}', space=vmem, size = 0x2000, scoped, tag = 'output window, operand 0, single buffered']
    #allocation3 [shape = 's32[1]{0}', space=sflag, size = 0x4, scoped, tag = 'scoped memory for tpu_custom_call.1']
    %10 = vsyncpa [#allocation3], 0
    // Predicated region
    $region2: #{tpu_custom_call.1} parent=1 // pred_check
      _
    $region3: #{tpu_custom_call.1} parent=1 // pred_check_branch
      %12 = sbr.rel (0) target = $region5
    $region4: #{tpu_custom_call.1} parent=1 // pred_region
      _
    $region5: #{tpu_custom_call.1} parent=1 // pred_fallthru
      _
    // Predicated region
    $region6: #{tpu_custom_call.1} parent=1 // pred_check
      _
    $region7: #{tpu_custom_call.1} parent=1 // pred_check_branch
      %14 = sbr.rel (0) target = $region9
    $region8: #{tpu_custom_call.1} parent=1 // pred_region
      _
    $region9: #{tpu_custom_call.1} parent=1 // pred_fallthru
      _
    // Predicated region
    $region10: #{tpu_custom_call.1} parent=1 // pred_check
      _
    $region11: #{tpu_custom_call.1} parent=1 // pred_check_branch
      %16 = sbr.rel (0) target = $region13
    $region12: #{tpu_custom_call.1} parent=1 // pred_region
      _
    $region13: #{tpu_custom_call.1} parent=1 // pred_fallthru
      _
    // Predicated region
    $region14: #{tpu_custom_call.1} parent=1 // pred_check
      _
    $region15: #{tpu_custom_call.1} parent=1 // pred_check_branch
      %18 = sbr.rel (0) target = $region17
    $region16: #{tpu_custom_call.1} parent=1 // pred_region
      _
    $region17: #{tpu_custom_call.1} parent=1 // pred_fallthru
      _
    // Predicated region
    $region18: #{tpu_custom_call.1} parent=1 // pred_check
      _
    $region19: #{tpu_custom_call.1} parent=1 // pred_check_branch
      %20 = sbr.rel (0) target = $region21
    $region20: #{tpu_custom_call.1} parent=1 // pred_region
      _
    $region21: #{tpu_custom_call.1} parent=1 // pred_fallthru
      _
    %v22 = vld [vmem:[%s0] sm:$0xff]
    %v23 = vld [vmem:[%s0 + $0x8] sm:$0xff]
    %v24 = vpack.c.bf16 %v23, %v22
    %v25 = vld [vmem:[%s1] sm:$0xf]
    %v26 = vld [vmem:[%s1 + $0x4] sm:$0xf]
    %v27 = vld [vmem:[%s1 + $0x8] sm:$0xf]
    %v28 = vld [vmem:[%s1 + $0xc] sm:$0xf]
    %v29 = vld [vmem:[%s2] sm:$0x1]
    %v31 = vlaneseq
    %v32 = vshrl.u32 %v31, 7
    %v33 = vsub.s32 0, %v32
    %v34 = vrot.slane %v29, %v33
    %v40 = vunpack.c.l.b16 %v25
    %v41 = vunpack.c.l.b16 %v26
    %v42 = vunpack.c.l.b16 %v27
    %v43 = vunpack.c.l.b16 %v28
    %v44 = vpack.c.b16 %v41, %v40
    %v45 = vpack.c.b16 %v43, %v42
    %vm48 = vcmask 261120
    %v50 = vsel %vm48, %v24, 0
    %52 = vmatprep.subr.bf16.mxu0 0
    %53 = vmatpush1.bf16.msra.mxu0 0
    %54 = vmatprep.subr.bf16.mxu0 0
    %55 = vmatpush1.bf16.msra.mxu0 0
    %56 = vmatprep.subr.bf16.mxu0 0
    %57 = vmatpush1.bf16.msra.mxu0 0
    %58 = vmatprep.subr.bf16.mxu0 0
    %59 = vmatpush1.bf16.msra.mxu0 0
    %60 = vmatprep.subr.bf16.mxu0 0
    %61 = vmatpush1.bf16.msra.mxu0 0
    %62 = vmatprep.subr.bf16.mxu0 0
    %63 = vmatpush1.bf16.msra.mxu0 0
    %64 = vmatprep.subr.bf16.mxu0 0
    %65 = vmatpush1.bf16.msra.mxu0 %v45
    %66 = vmatprep.subr.bf16.mxu0 0
    %67 = vmatpush1.bf16.msra.mxu0 %v44
    %68 = vmatprep.subr.bf16.mxu0 0
    %69 = vmatpush2.bf16.msra.mxu0 0
    %70 = vmatprep.subr.bf16.mxu0 0
    %71 = vmatpush2.bf16.msra.mxu0 0
    %72 = vmatprep.subr.bf16.mxu0 0
    %73 = vmatpush2.bf16.msra.mxu0 0
    %74 = vmatprep.subr.bf16.mxu0 0
    %75 = vmatpush2.bf16.msra.mxu0 0
    %76 = vmatprep.subr.bf16.mxu0 0
    %77 = vmatpush2.bf16.msra.mxu0 0
    %78 = vmatprep.subr.bf16.mxu0 0
    %79 = vmatpush2.bf16.msra.mxu0 0
    %80 = vmatprep.subr.bf16.mxu0 0
    %81 = vmatpush2.bf16.msra.mxu0 0
    %82 = vmatprep.subr.bf16.mxu0 0
    %83 = vmatpush2.bf16.msra.mxu0 0
    %84 = vmatprep.mubr.bf16.mxu0 0
    %85 = vmatmul.mubr.bf16.gmra.mxu0 %v50
    %v86 = vpop.f32.mrf.mxu0
    %v87 = vadd.f32 %v34, %v86
    %v88 = vpop.f32.mrf.mxu0
    %v89 = vpop.f32.mrf.mxu0
    %v90 = vadd.f32 %v34, %v89
    %v91 = vpop.f32.mrf.mxu0
    %92 = vdwg.mxu0
    %v93 = vmul.f32 %v87, 0.5
    %v94 = vmul.f32 %v90, 0.5
    %v95 = vrcp.pop 1.4142135
    %v96 = vmul.f32 %v87, %v95
    %v97 = vmul.f32 %v90, %v95
    %v98 = verf.f32.pop %v96
    %v99 = verf.f32.pop %v97
    %v100 = vadd.f32 %v98, 1.0
    %v101 = vadd.f32 %v99, 1.0
    %v102 = vmul.f32 %v93, %v100
    %v103 = vmul.f32 %v94, %v101
    %v104 = vpack.c.bf16 %v103, %v102
    %v105 = vld [vmem:[%s3] sm:$0xf]
    %v106 = vld [vmem:[%s3 + $0x4] sm:$0xf]
    %v107 = vld [vmem:[%s3 + $0x8] sm:$0xf]
    %v108 = vld [vmem:[%s3 + $0xc] sm:$0xf]
    %v109 = vld [vmem:[%s3 + $0x10] sm:$0xf]
    %v110 = vld [vmem:[%s3 + $0x14] sm:$0xf]
    %v111 = vld [vmem:[%s3 + $0x18] sm:$0xf]
    %v112 = vld [vmem:[%s3 + $0x1c] sm:$0xf]
    %v113 = vld [vmem:[%s4] sm:$0x1]
    %v115 = vlaneseq
    %v116 = vshrl.u32 %v115, 7
    %v117 = vsub.s32 0, %v116
    %v118 = vrot.slane %v113, %v117
    %v128 = vunpack.c.l.b16 %v105
    %v129 = vunpack.c.l.b16 %v106
    %v130 = vunpack.c.l.b16 %v107
    %v131 = vunpack.c.l.b16 %v108
    %v132 = vunpack.c.l.b16 %v109
    %v133 = vunpack.c.l.b16 %v110
    %v134 = vunpack.c.l.b16 %v111
    %v135 = vunpack.c.l.b16 %v112
    %v136 = vpack.c.b16 %v129, %v128
    %v137 = vpack.c.b16 %v131, %v130
    %v138 = vpack.c.b16 %v133, %v132
    %v139 = vpack.c.b16 %v135, %v134
    %vm144 = vcmask 523264
    %v146 = vsel %vm144, %v104, 0
    %148 = vmatprep.subr.bf16.mxu0 0
    %149 = vmatpush1.bf16.msra.mxu0 0
    %150 = vmatprep.subr.bf16.mxu0 0
    %151 = vmatpush1.bf16.msra.mxu0 0
    %152 = vmatprep.subr.bf16.mxu0 0
    %153 = vmatpush1.bf16.msra.mxu0 0
    %154 = vmatprep.subr.bf16.mxu0 0
    %155 = vmatpush1.bf16.msra.mxu0 0
    %156 = vmatprep.subr.bf16.mxu0 0
    %157 = vmatpush1.bf16.msra.mxu0 %v139
    %158 = vmatprep.subr.bf16.mxu0 0
    %159 = vmatpush1.bf16.msra.mxu0 %v138
    %160 = vmatprep.subr.bf16.mxu0 0
    %161 = vmatpush1.bf16.msra.mxu0 %v137
    %162 = vmatprep.subr.bf16.mxu0 0
    %163 = vmatpush1.bf16.msra.mxu0 %v136
    %164 = vmatprep.subr.bf16.mxu0 0
    %165 = vmatpush2.bf16.msra.mxu0 0
    %166 = vmatprep.subr.bf16.mxu0 0
    %167 = vmatpush2.bf16.msra.mxu0 0
    %168 = vmatprep.subr.bf16.mxu0 0
    %169 = vmatpush2.bf16.msra.mxu0 0
    %170 = vmatprep.subr.bf16.mxu0 0
    %171 = vmatpush2.bf16.msra.mxu0 0
    %172 = vmatprep.subr.bf16.mxu0 0
    %173 = vmatpush2.bf16.msra.mxu0 0
    %174 = vmatprep.subr.bf16.mxu0 0
    %175 = vmatpush2.bf16.msra.mxu0 0
    %176 = vmatprep.subr.bf16.mxu0 0
    %177 = vmatpush2.bf16.msra.mxu0 0
    %178 = vmatprep.subr.bf16.mxu0 0
    %179 = vmatpush2.bf16.msra.mxu0 0
    %180 = vmatprep.mubr.bf16.mxu0 0
    %181 = vmatmul.mubr.bf16.gmra.mxu0 %v146
    %v182 = vpop.f32.mrf.mxu0
    %v183 = vadd.f32 %v118, %v182
    %v184 = vpop.f32.mrf.mxu0
    %v185 = vpop.f32.mrf.mxu0
    %v186 = vadd.f32 %v118, %v185
    %v187 = vpop.f32.mrf.mxu0
    %188 = vdwg.mxu0
    %189 = vst.msk [vmem:[#allocation2] sm:$0xff] %vm48, %v183
    %190 = vst.msk [vmem:[#allocation2 + $0x8] sm:$0xff] %vm48, %v186
    // Predicated region
    $region22: #{tpu_custom_call.1} parent=1 // pred_check
      _
    $region23: #{tpu_custom_call.1} parent=1 // pred_check_branch
      %192 = sbr.rel (0) target = $region25
    $region24: #{tpu_custom_call.1} parent=1 // pred_region
      %s194 = ssub.s32 256, 256
      %195 = vsyncadd [#allocation3], %s194
      %s196 = sshll.u32 [#allocation2], 4
      %s197 = int_to_ptr.vmem [resolvable:$true] %s196
      %202 = dma.vmem_to_hbm [thread:$0]  %s197, 256, %s5, [#allocation3], 128, 128, 8
    $region25: #{tpu_custom_call.1} parent=1 // pred_fallthru
      _
    // Predicated region
    $region26: #{tpu_custom_call.1} parent=1 // pred_check
      _
    $region27: #{tpu_custom_call.1} parent=1 // pred_check_branch
      %204 = sbr.rel (0) target = $region29
    $region28: #{tpu_custom_call.1} parent=1 // pred_region
      %205 = dma.done [#allocation3], 256
    $region29: #{tpu_custom_call.1} parent=1 // pred_fallthru
      _
    %206 = vsyncpa [#allocation3], 1

</llo_original>
